<compile_context>
chip_gen: v5e
topology: v5e:2x2
jax: 0.10.0
libtpu: 0.0.40
codegen_flags: <defaults>
</compile_context>

<pallas_src>
import functools

import jax
import jax.numpy as jnp
from jax.experimental import pallas as pl
from jax.experimental.pallas import tpu as pltpu


def _round_up(x, m):
    return ((x + m - 1) // m) * m


def _sage_conv_kernel(x_dst_ref, adj_ref, x_src_ref, w_self_ref, w_neigh_ref, b_ref,
                      out_ref, agg_ref, deg_ref, *, apply_relu):
    """One (dst_block, src_block) grid step of a SAGEConv('mean') layer.

    x_dst_ref:   (tile_n, in_pad)   bf16  -- self features of this dst block
    adj_ref:     (tile_n, tile_s)   bf16  -- adjacency tile, adj[dst, src] in {0, 1}
    x_src_ref:   (tile_s, in_pad)   bf16  -- src features for this src block
    w_self_ref:  (in_pad, out_pad)  f32   -- W_self^T  (padded)
    w_neigh_ref: (in_pad, out_pad)  f32   -- W_neigh^T (padded)
    b_ref:       (1, out_pad)       f32
    out_ref:     (tile_n, out_pad)
    agg_ref:     (tile_n, in_pad)   f32 scratch (neighbor-sum accumulator)
    deg_ref:     (tile_n, 1)        f32 scratch (in-degree accumulator)
    """
    j = pl.program_id(1)

    @pl.when(j == 0)
    def _init():
        agg_ref[...] = jnp.zeros_like(agg_ref)
        deg_ref[...] = jnp.zeros_like(deg_ref)

    adj_tile = adj_ref[...]
    # Neighbor-feature sum for this dst block: bf16 MXU matmul, f32 accumulation.
    agg_ref[...] += jnp.dot(adj_tile, x_src_ref[...],
                            preferred_element_type=jnp.float32)
    # In-degree for this dst block (XLU row-reduce; adj entries are exactly 0/1).
    deg_ref[...] += jnp.sum(adj_tile.astype(jnp.float32), axis=1, keepdims=True)

    @pl.when(j == pl.num_programs(1) - 1)
    def _finalize():
        inv_deg = 1.0 / jnp.maximum(deg_ref[...], 1.0)          # (tile_n, 1)
        h_neigh = agg_ref[...] * inv_deg                         # mean aggregation
        h_self = x_dst_ref[...].astype(jnp.float32)              # (tile_n, in_pad)
        out = jnp.dot(h_self, w_self_ref[...], preferred_element_type=jnp.float32)
        out = out + jnp.dot(h_neigh, w_neigh_ref[...], preferred_element_type=jnp.float32)
        out = out + b_ref[...]
        if apply_relu:
            out = jnp.maximum(out, 0.0)
        out_ref[...] = out.astype(out_ref.dtype)


def _sage_conv_layer(x, adj, w_self_t, w_neigh_t, bias, *, tile_n, tile_s,
                     apply_relu, out_dtype):
    """x: (n_pad, in_pad) bf16; adj: (n_pad, n_pad) bf16;
    w_self_t / w_neigh_t: (in_pad, out_pad) f32; bias: (1, out_pad) f32
    -> (n_pad, out_pad) out_dtype."""
    n_pad, in_pad = x.shape
    _, out_pad = w_self_t.shape
    grid = (n_pad // tile_n, n_pad // tile_s)

    # VMEM budget: double-buffered inputs/outputs + f32 accumulators, with headroom.
    out_bytes = jnp.dtype(out_dtype).itemsize
    est = (2 * (tile_n * in_pad * 2            # x_dst (bf16)
                + tile_n * tile_s * 2          # adj tile (bf16)
                + tile_s * in_pad * 2          # x_src (bf16)
                + 2 * in_pad * out_pad * 4     # W_self^T + W_neigh^T
                + out_pad * 4                  # bias
                + tile_n * out_pad * out_bytes)
           + tile_n * in_pad * 4               # f32 neighbor-sum scratch
           + tile_n * 4)                       # f32 degree scratch
    vmem_limit = int(min(64 * 1024 * 1024, max(32 * 1024 * 1024, 2 * est)))

    kernel = functools.partial(_sage_conv_kernel, apply_relu=apply_relu)

    return pl.pallas_call(
        kernel,
        out_shape=jax.ShapeDtypeStruct((n_pad, out_pad), out_dtype),
        grid_spec=pltpu.PrefetchScalarGridSpec(
            num_scalar_prefetch=0,
            grid=grid,
            in_specs=[
                pl.BlockSpec((tile_n, in_pad), lambda i, j: (i, 0)),      # x_dst (self)
                pl.BlockSpec((tile_n, tile_s), lambda i, j: (i, j)),      # adj tile
                pl.BlockSpec((tile_s, in_pad), lambda i, j: (j, 0)),      # x_src stream
                pl.BlockSpec((in_pad, out_pad), lambda i, j: (0, 0)),     # W_self^T
                pl.BlockSpec((in_pad, out_pad), lambda i, j: (0, 0)),     # W_neigh^T
                pl.BlockSpec((1, out_pad), lambda i, j: (0, 0)),          # bias
            ],
            out_specs=pl.BlockSpec((tile_n, out_pad), lambda i, j: (i, 0)),
            scratch_shapes=[
                pltpu.VMEM((tile_n, in_pad), jnp.float32),                # neighbor sum
                pltpu.VMEM((tile_n, 1), jnp.float32),                     # in-degree
            ],
        ),
        compiler_params=pltpu.CompilerParams(
            dimension_semantics=("parallel", "arbitrary"),
            vmem_limit_bytes=vmem_limit,
        ),
    )(x, adj, x, w_self_t, w_neigh_t, bias)


def graphsage_forward(x, adj, w_self1, w_neigh1, b1, w_self2, w_neigh2, b2,
                      *, tile_n_target=256, tile_s_target=512):
    """GraphSAGE forward.  x: (N, in_feats) f32; adj: (N, N) with adj[dst, src] in {0,1};
    weights in torch nn.Linear layout (out, in); biases (out,)."""
    N, in_feats = x.shape
    hidden = w_self1.shape[0]
    out_feats = w_self2.shape[0]

    # ---- tiling / padding ----------------------------------------------------------------
    if N <= tile_s_target:
        n_pad = _round_up(N, 128)          # lane-dense adjacency tile, single grid step
        tile_n = n_pad
        tile_s = n_pad
    else:
        tile_n = tile_n_target
        tile_s = tile_s_target
        n_pad = _round_up(N, max(tile_n, tile_s))

    in_pad = _round_up(in_feats, 128)
    hid_pad = _round_up(hidden, 128)
    out_pad = _round_up(out_feats, 128)

    # ---- padded / compressed operands ------------------------------------------------------
    adj_p = jnp.zeros((n_pad, n_pad), jnp.bfloat16).at[:N, :N].set(adj.astype(jnp.bfloat16))
    x_p = jnp.zeros((n_pad, in_pad), jnp.bfloat16).at[:N, :in_feats].set(x.astype(jnp.bfloat16))

    def pack_w(w, d_in, d_in_p, d_out, d_out_p):
        # torch nn.Linear weight (out, in) -> padded transposed (in_pad, out_pad) f32
        return (jnp.zeros((d_in_p, d_out_p), jnp.float32)
                .at[:d_in, :d_out].set(w.T.astype(jnp.float32)))

    def pack_b(b, d_out, d_out_p):
        return jnp.zeros((1, d_out_p), jnp.float32).at[0, :d_out].set(b.astype(jnp.float32))

    ws1 = pack_w(w_self1, in_feats, in_pad, hidden, hid_pad)
    wn1 = pack_w(w_neigh1, in_feats, in_pad, hidden, hid_pad)
    b1p = pack_b(b1, hidden, hid_pad)
    ws2 = pack_w(w_self2, hidden, hid_pad, out_feats, out_pad)
    wn2 = pack_w(w_neigh2, hidden, hid_pad, out_feats, out_pad)
    b2p = pack_b(b2, out_feats, out_pad)

    # ---- layer 1 (SAGEConv + ReLU, bf16 out feeds layer 2's bf16 stream) -------------------
    h1 = _sage_conv_layer(x_p, adj_p, ws1, wn1, b1p, tile_n=tile_n, tile_s=tile_s,
                          apply_relu=True, out_dtype=jnp.bfloat16)
    # ---- layer 2 (SAGEConv, f32 out) --------------------------------------------------------
    out_p = _sage_conv_layer(h1, adj_p, ws2, wn2, b2p, tile_n=tile_n, tile_s=tile_s,
                             apply_relu=False, out_dtype=jnp.float32)

    return out_p[:N, :out_feats]


def _reference(x, adj, w_self1, w_neigh1, b1, w_self2, w_neigh2, b2):
    """Pure-JAX f32 reference mirroring DGL SAGEConv('mean') semantics."""
    deg = jnp.maximum(jnp.sum(adj, axis=1, keepdims=True), 1.0)

    def layer(h, w_self, w_neigh, b):
        h_neigh = (adj @ h) / deg
        return h @ w_self.T + h_neigh @ w_neigh.T + b

    h1 = jax.nn.relu(layer(x, w_self1, w_neigh1, b1))
    return layer(h1, w_self2, w_neigh2, b2)


if __name__ == "__main__":
    key = jax.random.PRNGKey(0)
    N, in_feats, hidden, out_feats = 32, 32, 64, 16

    k_x, k1, k2, k3, k4, k5, k6 = jax.random.split(key, 7)
    x = jax.random.normal(k_x, (N, in_feats), dtype=jnp.float32)

    # nn.Linear-layout parameters: W (out, in), bias (out,)
    w_self1 = 0.1 * jax.random.normal(k1, (hidden, in_feats), dtype=jnp.float32)
    w_neigh1 = 0.1 * jax.random.normal(k2, (hidden, in_feats), dtype=jnp.float32)
    b1 = 0.1 * jax.random.normal(k3, (hidden,), dtype=jnp.float32)
    w_self2 = 0.1 * jax.random.normal(k4, (out_feats, hidden), dtype=jnp.float32)
    w_neigh2 = 0.1 * jax.random.normal(k5, (out_feats, hidden), dtype=jnp.float32)
    b2 = 0.1 * jax.random.normal(k6, (out_feats,), dtype=jnp.float32)

    # graph: self-loops + bidirectional ring -> every node has in-degree 3
    idx = jnp.arange(N)
    adj = jnp.zeros((N, N), dtype=jnp.float32)
    adj = adj.at[idx, idx].set(1.0)
    adj = adj.at[idx, (idx - 1) % N].set(1.0)
    adj = adj.at[idx, (idx + 1) % N].set(1.0)

    out = graphsage_forward(x, adj, w_self1, w_neigh1, b1, w_self2, w_neigh2, b2)
    out = jax.block_until_ready(out)

    ref = _reference(x, adj, w_self1, w_neigh1, b1, w_self2, w_neigh2, b2)
    assert out.shape == (N, out_feats)
    max_err = float(jnp.max(jnp.abs(out - ref)))
    assert jnp.allclose(out, ref, atol=2e-2, rtol=2e-2), f"max abs err = {max_err}"

    print("KERNEL_OK")
</pallas_src>

<mosaic_0001>
module attributes {stable_mosaic.version = 11 : i64} {
  func.func @_sage_conv_kernel(%arg0: i32, %arg1: i32, %arg2: memref<128x128xbf16, #tpu.memory_space<vmem>>, %arg3: memref<128x128xbf16, #tpu.memory_space<vmem>>, %arg4: memref<128x128xbf16, #tpu.memory_space<vmem>>, %arg5: memref<128x128xf32, #tpu.memory_space<vmem>>, %arg6: memref<128x128xf32, #tpu.memory_space<vmem>>, %arg7: memref<1x128xf32, #tpu.memory_space<vmem>>, %arg8: memref<128x128xbf16, #tpu.memory_space<vmem>>, %arg9: memref<128x128xf32, #tpu.memory_space<vmem>>, %arg10: memref<128x1xf32, #tpu.memory_space<vmem>>) attributes {dimension_semantics = [#tpu.dimension_semantics<parallel>, #tpu.dimension_semantics<arbitrary>], iteration_bounds = array<i64: 1, 1>, scalar_prefetch = 0 : i64, scratch_operands = 2 : i64, tpu.core_type = #tpu.core_type<tc>, window_params = [{transform_indices = @transform_0, window_bounds = array<i64: 128, 128>}, {transform_indices = @transform_1, window_bounds = array<i64: 128, 128>}, {transform_indices = @transform_2, window_bounds = array<i64: 128, 128>}, {pipeline_mode = #tpu.pipeline_mode<synchronous>, transform_indices = @transform_3, window_bounds = array<i64: 128, 128>}, {pipeline_mode = #tpu.pipeline_mode<synchronous>, transform_indices = @transform_4, window_bounds = array<i64: 128, 128>}, {pipeline_mode = #tpu.pipeline_mode<synchronous>, transform_indices = @transform_5, window_bounds = array<i64: 1, 128>}, {transform_indices = @transform_6, window_bounds = array<i64: 128, 128>}]} {
    %c0_i32 = arith.constant 0 : i32
    %0 = arith.cmpi eq, %arg1, %c0_i32 : i32
    %1 = arith.extui %0 : i1 to i32
    %c0_i32_0 = arith.constant 0 : i32
    %2 = arith.cmpi ne, %1, %c0_i32_0 : i32
    scf.if %2 {
      %cst_15 = arith.constant 0.000000e+00 : f32
      %18 = vector.broadcast %cst_15 : f32 to vector<128x128xf32>
      %c0_16 = arith.constant 0 : index
      %c0_17 = arith.constant 0 : index
      %19 = vector.load %arg9[%c0_16, %c0_17] : memref<128x128xf32, #tpu.memory_space<vmem>>, vector<128x128xf32>
      tpu.vector_store %arg9[%c0_16, %c0_17], %18 {strides = array<i32>} : memref<128x128xf32, #tpu.memory_space<vmem>>, vector<128x128xf32>,
      %cst_18 = arith.constant 0.000000e+00 : f32
      %20 = vector.broadcast %cst_18 : f32 to vector<128x1xf32>
      %c0_19 = arith.constant 0 : index
      %c0_20 = arith.constant 0 : index
      %21 = vector.load %arg10[%c0_19, %c0_20] : memref<128x1xf32, #tpu.memory_space<vmem>>, vector<128x1xf32>
      tpu.vector_store %arg10[%c0_19, %c0_20], %20 {strides = array<i32>} : memref<128x1xf32, #tpu.memory_space<vmem>>, vector<128x1xf32>,
    } else {
    }
    %c0 = arith.constant 0 : index
    %c0_1 = arith.constant 0 : index
    %3 = vector.load %arg3[%c0, %c0_1] : memref<128x128xbf16, #tpu.memory_space<vmem>>, vector<128x128xbf16>
    %c0_2 = arith.constant 0 : index
    %c0_3 = arith.constant 0 : index
    %4 = vector.load %arg9[%c0_2, %c0_3] : memref<128x128xf32, #tpu.memory_space<vmem>>, vector<128x128xf32>
    %c0_4 = arith.constant 0 : index
    %c0_5 = arith.constant 0 : index
    %5 = vector.load %arg4[%c0_4, %c0_5] : memref<128x128xbf16, #tpu.memory_space<vmem>>, vector<128x128xbf16>
    %cst = arith.constant dense<0.000000e+00> : vector<128x128xf32>
    %6 = tpu.matmul %3, %5, %cst {dimension_numbers = #tpu.dot_dimension_numbers<[1], [0], [0], [1], [0, 0, 1, 1], [], []>} : vector<128x128xbf16>, vector<128x128xbf16>, vector<128x128xf32> -> vector<128x128xf32>
    %7 = arith.addf %4, %6 : vector<128x128xf32>
    %c0_6 = arith.constant 0 : index
    %c0_7 = arith.constant 0 : index
    %8 = vector.load %arg9[%c0_6, %c0_7] : memref<128x128xf32, #tpu.memory_space<vmem>>, vector<128x128xf32>
    tpu.vector_store %arg9[%c0_6, %c0_7], %7 {strides = array<i32>} : memref<128x128xf32, #tpu.memory_space<vmem>>, vector<128x128xf32>,
    %c0_8 = arith.constant 0 : index
    %c0_9 = arith.constant 0 : index
    %9 = vector.load %arg10[%c0_8, %c0_9] : memref<128x1xf32, #tpu.memory_space<vmem>>, vector<128x1xf32>
    %10 = arith.extf %3 : vector<128x128xbf16> to vector<128x128xf32>
    %cst_10 = arith.constant dense<0.000000e+00> : vector<128xf32>
    %11 = vector.multi_reduction <add>, %10, %cst_10 [1] : vector<128x128xf32> to vector<128xf32>
    %12 = vector.shape_cast %11 : vector<128xf32> to vector<128x1xf32>
    %13 = arith.addf %9, %12 : vector<128x1xf32>
    %c0_11 = arith.constant 0 : index
    %c0_12 = arith.constant 0 : index
    %14 = vector.load %arg10[%c0_11, %c0_12] : memref<128x1xf32, #tpu.memory_space<vmem>>, vector<128x1xf32>
    tpu.vector_store %arg10[%c0_11, %c0_12], %13 {strides = array<i32>} : memref<128x1xf32, #tpu.memory_space<vmem>>, vector<128x1xf32>,
    %c0_i32_13 = arith.constant 0 : i32
    %15 = arith.cmpi eq, %arg1, %c0_i32_13 : i32
    %16 = arith.extui %15 : i1 to i32
    %c0_i32_14 = arith.constant 0 : i32
    %17 = arith.cmpi ne, %16, %c0_i32_14 : i32
    scf.if %17 {
      %c0_15 = arith.constant 0 : index
      %c0_16 = arith.constant 0 : index
      %18 = vector.load %arg10[%c0_15, %c0_16] : memref<128x1xf32, #tpu.memory_space<vmem>>, vector<128x1xf32>
      %cst_17 = arith.constant 1.000000e+00 : f32
      %19 = vector.broadcast %cst_17 : f32 to vector<128x1xf32>
      %20 = arith.maximumf %18, %19 : vector<128x1xf32>
      %cst_18 = arith.constant 1.000000e+00 : f32
      %21 = vector.broadcast %cst_18 : f32 to vector<128x1xf32>
      %22 = arith.divf %21, %20 : vector<128x1xf32>
      %c0_19 = arith.constant 0 : index
      %c0_20 = arith.constant 0 : index
      %23 = vector.load %arg9[%c0_19, %c0_20] : memref<128x128xf32, #tpu.memory_space<vmem>>, vector<128x128xf32>
      %24 = vector.broadcast %22 : vector<128x1xf32> to vector<128x128xf32>
      %25 = arith.mulf %23, %24 : vector<128x128xf32>
      %c0_21 = arith.constant 0 : index
      %c0_22 = arith.constant 0 : index
      %26 = vector.load %arg2[%c0_21, %c0_22] : memref<128x128xbf16, #tpu.memory_space<vmem>>, vector<128x128xbf16>
      %27 = arith.extf %26 : vector<128x128xbf16> to vector<128x128xf32>
      %c0_23 = arith.constant 0 : index
      %c0_24 = arith.constant 0 : index
      %28 = vector.load %arg5[%c0_23, %c0_24] : memref<128x128xf32, #tpu.memory_space<vmem>>, vector<128x128xf32>
      %cst_25 = arith.constant dense<0.000000e+00> : vector<128x128xf32>
      %29 = tpu.matmul %27, %28, %cst_25 {dimension_numbers = #tpu.dot_dimension_numbers<[1], [0], [0], [1], [0, 0, 1, 1], [], []>} : vector<128x128xf32>, vector<128x128xf32>, vector<128x128xf32> -> vector<128x128xf32>
      %c0_26 = arith.constant 0 : index
      %c0_27 = arith.constant 0 : index
      %30 = vector.load %arg6[%c0_26, %c0_27] : memref<128x128xf32, #tpu.memory_space<vmem>>, vector<128x128xf32>
      %cst_28 = arith.constant dense<0.000000e+00> : vector<128x128xf32>
      %31 = tpu.matmul %25, %30, %cst_28 {dimension_numbers = #tpu.dot_dimension_numbers<[1], [0], [0], [1], [0, 0, 1, 1], [], []>} : vector<128x128xf32>, vector<128x128xf32>, vector<128x128xf32> -> vector<128x128xf32>
      %32 = arith.addf %29, %31 : vector<128x128xf32>
      %c0_29 = arith.constant 0 : index
      %c0_30 = arith.constant 0 : index
      %33 = vector.load %arg7[%c0_29, %c0_30] : memref<1x128xf32, #tpu.memory_space<vmem>>, vector<1x128xf32>
      %34 = vector.broadcast %33 : vector<1x128xf32> to vector<128x128xf32>
      %35 = arith.addf %32, %34 : vector<128x128xf32>
      %cst_31 = arith.constant 0.000000e+00 : f32
      %36 = vector.broadcast %cst_31 : f32 to vector<128x128xf32>
      %37 = arith.maximumf %35, %36 : vector<128x128xf32>
      %38 = arith.truncf %37 : vector<128x128xf32> to vector<128x128xbf16>
      %c0_32 = arith.constant 0 : index
      %c0_33 = arith.constant 0 : index
      %39 = vector.load %arg8[%c0_32, %c0_33] : memref<128x128xbf16, #tpu.memory_space<vmem>>, vector<128x128xbf16>
      tpu.vector_store %arg8[%c0_32, %c0_33], %38 {strides = array<i32>} : memref<128x128xbf16, #tpu.memory_space<vmem>>, vector<128x128xbf16>,
    } else {
    }
    return
  }
  func.func @transform_0(%arg0: i32, %arg1: i32) -> (i32, i32) {
    %c0_i32 = arith.constant 0 : i32
    %c0_i32_0 = arith.constant 0 : i32
    return %arg0, %c0_i32 : i32, i32
  }
  func.func @transform_1(%arg0: i32, %arg1: i32) -> (i32, i32) {
    %c0_i32 = arith.constant 0 : i32
    return %arg0, %arg1 : i32, i32
  }
  func.func @transform_2(%arg0: i32, %arg1: i32) -> (i32, i32) {
    %c0_i32 = arith.constant 0 : i32
    %c0_i32_0 = arith.constant 0 : i32
    return %arg1, %c0_i32 : i32, i32
  }
  func.func @transform_3(%arg0: i32, %arg1: i32) -> (i32, i32) {
    %c0_i32 = arith.constant 0 : i32
    %c0_i32_0 = arith.constant 0 : i32
    %c0_i32_1 = arith.constant 0 : i32
    return %c0_i32, %c0_i32_0 : i32, i32
  }
  func.func @transform_4(%arg0: i32, %arg1: i32) -> (i32, i32) {
    %c0_i32 = arith.constant 0 : i32
    %c0_i32_0 = arith.constant 0 : i32
    %c0_i32_1 = arith.constant 0 : i32
    return %c0_i32, %c0_i32_0 : i32, i32
  }
  func.func @transform_5(%arg0: i32, %arg1: i32) -> (i32, i32) {
    %c0_i32 = arith.constant 0 : i32
    %c0_i32_0 = arith.constant 0 : i32
    %c0_i32_1 = arith.constant 0 : i32
    return %c0_i32, %c0_i32_0 : i32, i32
  }
  func.func @transform_6(%arg0: i32, %arg1: i32) -> (i32, i32) {
    %c0_i32 = arith.constant 0 : i32
    %c0_i32_0 = arith.constant 0 : i32
    return %arg0, %c0_i32 : i32, i32
  }
}

</mosaic_0001>

<llo_original>
// kernel: tpu_custom_call.1
$region0: #{tpu_custom_call.1}
  #allocation0 [shape = 'u32[]', space=smem, size = 0x4, offset = 0x4, fixed_abs, tag = 'smem constant byte address 0x4 - core index']
  #allocation1 [shape = 'u32[72,128]{1,0:T(1,128)}', space=vmem, size = 0x9000, scoped, tag = 'internal scratch']
  #allocation2 [shape = 'f32[128,128]{1,0:T(8,128)}', space=vmem, size = 0x10000, scoped, tag = 'scratch operand']
  #allocation3 [shape = 'f32[128,1]{1,0:T(8,128)}', space=vmem, size = 0x10000, scoped, tag = 'scratch operand']
  %s0 = inlined_call_operand.hbm [shape: bf16[128,128], index: 0, kind: input, shape index: {}]
  %s1 = inlined_call_operand.hbm [shape: bf16[128,128], index: 1, kind: input, shape index: {}]
  %s2 = inlined_call_operand.hbm [shape: bf16[128,128], index: 2, kind: input, shape index: {}]
  %s3 = inlined_call_operand.hbm [shape: f32[128,128], index: 3, kind: input, shape index: {}]
  %s4 = inlined_call_operand.hbm [shape: f32[128,128], index: 4, kind: input, shape index: {}]
  %s5 = inlined_call_operand.vmem [shape: f32[1,128], index: 5, kind: input, shape index: {}]
  %s6 = inlined_call_operand.hbm [shape: bf16[128,128], index: 6, kind: output, shape index: {}]
  %s7 = sld [smem:[#allocation0]]
  $region62: #{tpu_custom_call.1} parent=0
    _
  %s9 = ssub.s32 1, %s7
  %s10 = scalar_select 0, %s9, %s7
  $region1: #{tpu_custom_call.1} parent=0
    #allocation4 [shape = 'u8[32768]{0}', space=vmem, size = 0x8000, scoped, tag = 'input window, operand 0, single buffered']
    #allocation5 [shape = 's32[1]{0}', space=sflag, size = 0x4, scoped, tag = 'scoped memory for tpu_custom_call.1']
    #allocation6 [shape = 's32[1]{0}', space=sflag, size = 0x4, scoped, tag = 'scoped memory for tpu_custom_call.1']
    #allocation7 [shape = 'u8[32768]{0}', space=vmem, size = 0x8000, scoped, tag = 'input window, operand 1, single buffered']
    #allocation8 [shape = 's32[1]{0}', space=sflag, size = 0x4, scoped, tag = 'scoped memory for tpu_custom_call.1']
    #allocation9 [shape = 'u8[32768]{0}', space=vmem, size = 0x8000, scoped, tag = 'input window, operand 2, single buffered']
    #allocation10 [shape = 'u8[65536]{0}', space=vmem, size = 0x10000, scoped, tag = 'input window, operand 3, single buffered']
    #allocation11 [shape = 's32[1]{0}', space=sflag, size = 0x4, scoped, tag = 'scoped memory for tpu_custom_call.1']
    #allocation12 [shape = 'u8[65536]{0}', space=vmem, size = 0x10000, scoped, tag = 'input window, operand 4, single buffered']
    #allocation13 [shape = 'u8[32768]{0}', space=vmem, size = 0x8000, scoped, tag = 'output window, operand 0, single buffered']
    %11 = vsyncpa [#allocation5], 0
    %12 = vsyncpa [#allocation8], 0
    %13 = vsyncpa [#allocation11], 0
    %14 = vsyncpa [#allocation6], 0
    // Predicated region
    $region2: #{tpu_custom_call.1} parent=1 // pred_check
      _
    $region3: #{tpu_custom_call.1} parent=1 // pred_check_branch
      %16 = sbr.rel (0) target = $region5
    $region4: #{tpu_custom_call.1} parent=1 // pred_region
      %18 = vsyncadd [#allocation5], 0
      %s19 = sshll.u32 %s0, 4
      %s20 = int_to_ptr.hbm [resolvable:$true] %s19
      %s21 = sshll.u32 [#allocation4], 4
      %s22 = int_to_ptr.vmem [resolvable:$true] %s21
      %27 = dma.hbm_to_vmem [thread:$0]  %s20, 1024, %s22, [#allocation5], 64, 64, 4
    $region5: #{tpu_custom_call.1} parent=1 // pred_fallthru
      _
    // Predicated region
    $region6: #{tpu_custom_call.1} parent=1 // pred_check
      _
    $region7: #{tpu_custom_call.1} parent=1 // pred_check_branch
      %29 = sbr.rel (0) target = $region9
    $region8: #{tpu_custom_call.1} parent=1 // pred_region
      %31 = vsyncadd [#allocation8], 0
      %s32 = sshll.u32 %s1, 4
      %s33 = int_to_ptr.hbm [resolvable:$true] %s32
      %s34 = sshll.u32 [#allocation7], 4
      %s35 = int_to_ptr.vmem [resolvable:$true] %s34
      %40 = dma.hbm_to_vmem [thread:$0]  %s33, 1024, %s35, [#allocation8], 64, 64, 4
    $region9: #{tpu_custom_call.1} parent=1 // pred_fallthru
      _
    // Predicated region
    $region10: #{tpu_custom_call.1} parent=1 // pred_check
      _
    $region11: #{tpu_custom_call.1} parent=1 // pred_check_branch
      %42 = sbr.rel (0) target = $region13
    $region12: #{tpu_custom_call.1} parent=1 // pred_region
      %44 = vsyncadd [#allocation8], 0
      %s45 = sshll.u32 %s2, 4
      %s46 = int_to_ptr.hbm [resolvable:$true] %s45
      %s47 = sshll.u32 [#allocation9], 4
      %s48 = int_to_ptr.vmem [resolvable:$true] %s47
      %53 = dma.hbm_to_vmem [thread:$0]  %s46, 1024, %s48, [#allocation8], 64, 64, 4
    $region13: #{tpu_custom_call.1} parent=1 // pred_fallthru
      _
    // Predicated region
    $region14: #{tpu_custom_call.1} parent=1 // pred_check
      _
    $region15: #{tpu_custom_call.1} parent=1 // pred_check_branch
      %55 = sbr.rel (0) target = $region17
    $region16: #{tpu_custom_call.1} parent=1 // pred_region
      %57 = vsyncadd [#allocation11], 0
      %s58 = sshll.u32 %s3, 4
      %s59 = int_to_ptr.hbm [resolvable:$true] %s58
      %s60 = sshll.u32 [#allocation10], 4
      %s61 = int_to_ptr.vmem [resolvable:$true] %s60
      %66 = dma.hbm_to_vmem [thread:$0]  %s59, 2048, %s61, [#allocation11], 128, 128, 8
    $region17: #{tpu_custom_call.1} parent=1 // pred_fallthru
      _
    // Predicated region
    $region18: #{tpu_custom_call.1} parent=1 // pred_check
      _
    $region19: #{tpu_custom_call.1} parent=1 // pred_check_branch
      %68 = sbr.rel (0) target = $region21
    $region20: #{tpu_custom_call.1} parent=1 // pred_region
      %70 = vsyncadd [#allocation11], 0
      %s71 = sshll.u32 %s4, 4
      %s72 = int_to_ptr.hbm [resolvable:$true] %s71
      %s73 = sshll.u32 [#allocation12], 4
      %s74 = int_to_ptr.vmem [resolvable:$true] %s73
      %79 = dma.hbm_to_vmem [thread:$0]  %s72, 2048, %s74, [#allocation11], 128, 128, 8
    $region21: #{tpu_custom_call.1} parent=1 // pred_fallthru
      _
    // Predicated region
    $region22: #{tpu_custom_call.1} parent=1 // pred_check
      _
    $region23: #{tpu_custom_call.1} parent=1 // pred_check_branch
      %81 = sbr.rel (0) target = $region25
    $region24: #{tpu_custom_call.1} parent=1 // pred_region
      _
    $region25: #{tpu_custom_call.1} parent=1 // pred_fallthru
      _
    // Predicated region
    $region26: #{tpu_custom_call.1} parent=1 // pred_check
      _
    $region27: #{tpu_custom_call.1} parent=1 // pred_check_branch
      %83 = sbr.rel (0) target = $region29
    $region28: #{tpu_custom_call.1} parent=1 // pred_region
      %85 = dma.done [#allocation5], 1024
    $region29: #{tpu_custom_call.1} parent=1 // pred_fallthru
      _
    // Predicated region
    $region30: #{tpu_custom_call.1} parent=1 // pred_check
      _
    $region31: #{tpu_custom_call.1} parent=1 // pred_check_branch
      %87 = sbr.rel (0) target = $region33
    $region32: #{tpu_custom_call.1} parent=1 // pred_region
      %89 = dma.done [#allocation8], 1024
    $region33: #{tpu_custom_call.1} parent=1 // pred_fallthru
      _
    // Predicated region
    $region34: #{tpu_custom_call.1} parent=1 // pred_check
      _
    $region35: #{tpu_custom_call.1} parent=1 // pred_check_branch
      %91 = sbr.rel (0) target = $region37
    $region36: #{tpu_custom_call.1} parent=1 // pred_region
      %93 = dma.done [#allocation8], 1024
    $region37: #{tpu_custom_call.1} parent=1 // pred_fallthru
      _
    // Predicated region
    $region38: #{tpu_custom_call.1} parent=1 // pred_check
      _
    $region39: #{tpu_custom_call.1} parent=1 // pred_check_branch
      %95 = sbr.rel (0) target = $region41
    $region40: #{tpu_custom_call.1} parent=1 // pred_region
      %97 = dma.done [#allocation11], 2048
    $region41: #{tpu_custom_call.1} parent=1 // pred_fallthru
      _
    // Predicated region
    $region42: #{tpu_custom_call.1} parent=1 // pred_check
      _
    $region43: #{tpu_custom_call.1} parent=1 // pred_check_branch
      %99 = sbr.rel (0) target = $region45
    $region44: #{tpu_custom_call.1} parent=1 // pred_region
      %101 = dma.done [#allocation11], 2048
    $region45: #{tpu_custom_call.1} parent=1 // pred_fallthru
      _
    %p102 = scmp.eq.s32.totalorder 0, 0
    // Predicated region
    $region46: #{tpu_custom_call.1} parent=1 // pred_check
      %p103 = pneg %p102
    $region47: #{tpu_custom_call.1} parent=1 // pred_check_branch
      %105 = sbr.rel (%p103) target = $region49
    $region48: #{tpu_custom_call.1} parent=1 // pred_region
      %106 = vst [vmem:[#allocation2] sm:$0xff] 0.0
      %107 = vst [vmem:[#allocation2 + $0x8] sm:$0xff] 0.0
      %108 = vst [vmem:[#allocation2 + $0x10] sm:$0xff] 0.0
      %109 = vst [vmem:[#allocation2 + $0x18] sm:$0xff] 0.0
      %110 = vst [vmem:[#allocation2 + $0x20] sm:$0xff] 0.0
      %111 = vst [vmem:[#allocation2 + $0x28] sm:$0xff] 0.0
      %112 = vst [vmem:[#allocation2 + $0x30] sm:$0xff] 0.0
      %113 = vst [vmem:[#allocation2 + $0x38] sm:$0xff] 0.0
      %114 = vst [vmem:[#allocation2 + $0x40] sm:$0xff] 0.0
      %115 = vst [vmem:[#allocation2 + $0x48] sm:$0xff] 0.0
      %116 = vst [vmem:[#allocation2 + $0x50] sm:$0xff] 0.0
      %117 = vst [vmem:[#allocation2 + $0x58] sm:$0xff] 0.0
      %118 = vst [vmem:[#allocation2 + $0x60] sm:$0xff] 0.0
      %119 = vst [vmem:[#allocation2 + $0x68] sm:$0xff] 0.0
      %120 = vst [vmem:[#allocation2 + $0x70] sm:$0xff] 0.0
      %121 = vst [vmem:[#allocation2 + $0x78] sm:$0xff] 0.0
      %vm122 = vcmask 7168
      %123 = vst.msk [vmem:[#allocation3] sm:$0xff] %vm122, 0.0
      %124 = vst.msk [vmem:[#allocation3 + $0x8] sm:$0xff] %vm122, 0.0
      %125 = vst.msk [vmem:[#allocation3 + $0x10] sm:$0xff] %vm122, 0.0
      %126 = vst.msk [vmem:[#allocation3 + $0x18] sm:$0xff] %vm122, 0.0
      %127 = vst.msk [vmem:[#allocation3 + $0x20] sm:$0xff] %vm122, 0.0
      %128 = vst.msk [vmem:[#allocation3 + $0x28] sm:$0xff] %vm122, 0.0
      %129 = vst.msk [vmem:[#allocation3 + $0x30] sm:$0xff] %vm122, 0.0
      %130 = vst.msk [vmem:[#allocation3 + $0x38] sm:$0xff] %vm122, 0.0
      %131 = vst.msk [vmem:[#allocation3 + $0x40] sm:$0xff] %vm122, 0.0
      %132 = vst.msk [vmem:[#allocation3 + $0x48] sm:$0xff] %vm122, 0.0
      %133 = vst.msk [vmem:[#allocation3 + $0x50] sm:$0xff] %vm122, 0.0
      %134 = vst.msk [vmem:[#allocation3 + $0x58] sm:$0xff] %vm122, 0.0
      %135 = vst.msk [vmem:[#allocation3 + $0x60] sm:$0xff] %vm122, 0.0
      %136 = vst.msk [vmem:[#allocation3 + $0x68] sm:$0xff] %vm122, 0.0
      %137 = vst.msk [vmem:[#allocation3 + $0x70] sm:$0xff] %vm122, 0.0
      %138 = vst.msk [vmem:[#allocation3 + $0x78] sm:$0xff] %vm122, 0.0
    $region49: #{tpu_custom_call.1} parent=1 // pred_fallthru
      _
    %v139 = vld [vmem:[#allocation7] sm:$0xf]
    %v140 = vld [vmem:[#allocation7 + $0x4] sm:$0xf]
    %v141 = vld [vmem:[#allocation7 + $0x8] sm:$0xf]
    %v142 = vld [vmem:[#allocation7 + $0xc] sm:$0xf]
    %v143 = vld [vmem:[#allocation7 + $0x10] sm:$0xf]
    %v144 = vld [vmem:[#allocation7 + $0x14] sm:$0xf]
    %v145 = vld [vmem:[#allocation7 + $0x18] sm:$0xf]
    %v146 = vld [vmem:[#allocation7 + $0x1c] sm:$0xf]
    %v147 = vld [vmem:[#allocation7 + $0x20] sm:$0xf]
    %v148 = vld [vmem:[#allocation7 + $0x24] sm:$0xf]
    %v149 = vld [vmem:[#allocation7 + $0x28] sm:$0xf]
    %v150 = vld [vmem:[#allocation7 + $0x2c] sm:$0xf]
    %v151 = vld [vmem:[#allocation7 + $0x30] sm:$0xf]
    %v152 = vld [vmem:[#allocation7 + $0x34] sm:$0xf]
    %v153 = vld [vmem:[#allocation7 + $0x38] sm:$0xf]
    %v154 = vld [vmem:[#allocation7 + $0x3c] sm:$0xf]
    %v155 = vld [vmem:[#allocation2] sm:$0xff]
    %v156 = vld [vmem:[#allocation2 + $0x8] sm:$0xff]
    %v157 = vld [vmem:[#allocation2 + $0x10] sm:$0xff]
    %v158 = vld [vmem:[#allocation2 + $0x18] sm:$0xff]
    %v159 = vld [vmem:[#allocation2 + $0x20] sm:$0xff]
    %v160 = vld [vmem:[#allocation2 + $0x28] sm:$0xff]
    %v161 = vld [vmem:[#allocation2 + $0x30] sm:$0xff]
    %v162 = vld [vmem:[#allocation2 + $0x38] sm:$0xff]
    %v163 = vld [vmem:[#allocation2 + $0x40] sm:$0xff]
    %v164 = vld [vmem:[#allocation2 + $0x48] sm:$0xff]
    %v165 = vld [vmem:[#allocation2 + $0x50] sm:$0xff]
    %v166 = vld [vmem:[#allocation2 + $0x58] sm:$0xff]
    %v167 = vld [vmem:[#allocation2 + $0x60] sm:$0xff]
    %v168 = vld [vmem:[#allocation2 + $0x68] sm:$0xff]
    %v169 = vld [vmem:[#allocation2 + $0x70] sm:$0xff]
    %v170 = vld [vmem:[#allocation2 + $0x78] sm:$0xff]
    %v171 = vld [vmem:[#allocation9] sm:$0xf]
    %v172 = vld [vmem:[#allocation9 + $0x4] sm:$0xf]
    %v173 = vld [vmem:[#allocation9 + $0x8] sm:$0xf]
    %v174 = vld [vmem:[#allocation9 + $0xc] sm:$0xf]
    %v175 = vld [vmem:[#allocation9 + $0x10] sm:$0xf]
    %v176 = vld [vmem:[#allocation9 + $0x14] sm:$0xf]
    %v177 = vld [vmem:[#allocation9 + $0x18] sm:$0xf]
    %v178 = vld [vmem:[#allocation9 + $0x1c] sm:$0xf]
    %v179 = vld [vmem:[#allocation9 + $0x20] sm:$0xf]
    %v180 = vld [vmem:[#allocation9 + $0x24] sm:$0xf]
    %v181 = vld [vmem:[#allocation9 + $0x28] sm:$0xf]
    %v182 = vld [vmem:[#allocation9 + $0x2c] sm:$0xf]
    %v183 = vld [vmem:[#allocation9 + $0x30] sm:$0xf]
    %v184 = vld [vmem:[#allocation9 + $0x34] sm:$0xf]
    %v185 = vld [vmem:[#allocation9 + $0x38] sm:$0xf]
    %v186 = vld [vmem:[#allocation9 + $0x3c] sm:$0xf]
    %v203 = vunpack.c.l.b16 %v139
    %v204 = vunpack.c.l.b16 %v140
    %v205 = vunpack.c.l.b16 %v141
    %v206 = vunpack.c.l.b16 %v142
    %v207 = vunpack.c.l.b16 %v143
    %v208 = vunpack.c.l.b16 %v144
    %v209 = vunpack.c.l.b16 %v145
    %v210 = vunpack.c.l.b16 %v146
    %v211 = vunpack.c.l.b16 %v147
    %v212 = vunpack.c.l.b16 %v148
    %v213 = vunpack.c.l.b16 %v149
    %v214 = vunpack.c.l.b16 %v150
    %v215 = vunpack.c.l.b16 %v151
    %v216 = vunpack.c.l.b16 %v152
    %v217 = vunpack.c.l.b16 %v153
    %v218 = vunpack.c.l.b16 %v154
    %v219 = vpack.c.b16 %v204, %v203
    %v220 = vpack.c.b16 %v206, %v205
    %v221 = vpack.c.b16 %v208, %v207
    %v222 = vpack.c.b16 %v210, %v209
    %v223 = vpack.c.b16 %v212, %v211
    %v224 = vpack.c.b16 %v214, %v213
    %v225 = vpack.c.b16 %v216, %v215
    %v226 = vpack.c.b16 %v218, %v217
    %v251 = vunpack.c.l.b16 %v171
    %v252 = vunpack.c.l.b16 %v172
    %v253 = vunpack.c.l.b16 %v173
    %v254 = vunpack.c.l.b16 %v174
    %v255 = vunpack.c.l.b16 %v175
    %v256 = vunpack.c.l.b16 %v176
    %v257 = vunpack.c.l.b16 %v177
    %v258 = vunpack.c.l.b16 %v178
    %v259 = vunpack.c.l.b16 %v179
    %v260 = vunpack.c.l.b16 %v180
    %v261 = vunpack.c.l.b16 %v181
    %v262 = vunpack.c.l.b16 %v182
    %v263 = vunpack.c.l.b16 %v183
    %v264 = vunpack.c.l.b16 %v184
    %v265 = vunpack.c.l.b16 %v185
    %v266 = vunpack.c.l.b16 %v186
    %v267 = vpack.c.b16 %v252, %v251
    %v268 = vpack.c.b16 %v254, %v253
    %v269 = vpack.c.b16 %v256, %v255
    %v270 = vpack.c.b16 %v258, %v257
    %v271 = vpack.c.b16 %v260, %v259
    %v272 = vpack.c.b16 %v262, %v261
    %v273 = vpack.c.b16 %v264, %v263
    %v274 = vpack.c.b16 %v266, %v265
    %283 = vmatpush.bf16.msra.mxu0 %v274
    %284 = vmatpush.bf16.msra.mxu0 %v273
    %285 = vmatpush.bf16.msra.mxu0 %v272
    %286 = vmatpush.bf16.msra.mxu0 %v271
    %287 = vmatpush.bf16.msra.mxu0 %v270
    %288 = vmatpush.bf16.msra.mxu0 %v269
    %289 = vmatpush.bf16.msra.mxu0 %v268
    %290 = vmatpush.bf16.msra.mxu0 %v267
    %291 = vmatmul.bf16.gmra.mxu0 %v219
    %v292 = vpop.f32.mrf.mxu0
    %v293 = vadd.f32 0.0, %v292
    %v294 = vpop.f32.mrf.mxu0
    %v295 = vadd.f32 0.0, %v294
    %296 = vmatmul.bf16.gmra.mxu0 %v220
    %v297 = vpop.f32.mrf.mxu0
    %v298 = vadd.f32 0.0, %v297
    %v299 = vpop.f32.mrf.mxu0
    %v300 = vadd.f32 0.0, %v299
    %301 = vmatmul.bf16.gmra.mxu0 %v221
    %v302 = vpop.f32.mrf.mxu0
    %v303 = vadd.f32 0.0, %v302
    %v304 = vpop.f32.mrf.mxu0
    %v305 = vadd.f32 0.0, %v304
    %306 = vmatmul.bf16.gmra.mxu0 %v222
    %v307 = vpop.f32.mrf.mxu0
    %v308 = vadd.f32 0.0, %v307
    %v309 = vpop.f32.mrf.mxu0
    %v310 = vadd.f32 0.0, %v309
    %311 = vmatmul.bf16.gmra.mxu0 %v223
    %v312 = vpop.f32.mrf.mxu0
    %v313 = vadd.f32 0.0, %v312
    %v314 = vpop.f32.mrf.mxu0
    %v315 = vadd.f32 0.0, %v314
    %316 = vmatmul.bf16.gmra.mxu0 %v224
    %v317 = vpop.f32.mrf.mxu0
    %v318 = vadd.f32 0.0, %v317
    %v319 = vpop.f32.mrf.mxu0
    %v320 = vadd.f32 0.0, %v319
    %321 = vmatmul.bf16.gmra.mxu0 %v225
    %v322 = vpop.f32.mrf.mxu0
    %v323 = vadd.f32 0.0, %v322
    %v324 = vpop.f32.mrf.mxu0
    %v325 = vadd.f32 0.0, %v324
    %326 = vmatmul.bf16.gmra.mxu0 %v226
    %v327 = vpop.f32.mrf.mxu0
    %v328 = vadd.f32 0.0, %v327
    %v329 = vpop.f32.mrf.mxu0
    %v330 = vadd.f32 0.0, %v329
    %331 = vdwg.mxu0
    %v332 = vadd.f32 %v155, %v293
    %v333 = vadd.f32 %v156, %v295
    %v334 = vadd.f32 %v157, %v298
    %v335 = vadd.f32 %v158, %v300
    %v336 = vadd.f32 %v159, %v303
    %v337 = vadd.f32 %v160, %v305
    %v338 = vadd.f32 %v161, %v308
    %v339 = vadd.f32 %v162, %v310
    %v340 = vadd.f32 %v163, %v313
    %v341 = vadd.f32 %v164, %v315
    %v342 = vadd.f32 %v165, %v318
    %v343 = vadd.f32 %v166, %v320
    %v344 = vadd.f32 %v167, %v323
    %v345 = vadd.f32 %v168, %v325
    %v346 = vadd.f32 %v169, %v328
    %v347 = vadd.f32 %v170, %v330
    %348 = vst [vmem:[#allocation2] sm:$0xff] %v332
    %349 = vst [vmem:[#allocation2 + $0x8] sm:$0xff] %v333
    %350 = vst [vmem:[#allocation2 + $0x10] sm:$0xff] %v334
    %351 = vst [vmem:[#allocation2 + $0x18] sm:$0xff] %v335
    %352 = vst [vmem:[#allocation2 + $0x20] sm:$0xff] %v336
    %353 = vst [vmem:[#allocation2 + $0x28] sm:$0xff] %v337
    %354 = vst [vmem:[#allocation2 + $0x30] sm:$0xff] %v338
    %355 = vst [vmem:[#allocation2 + $0x38] sm:$0xff] %v339
    %356 = vst [vmem:[#allocation2 + $0x40] sm:$0xff] %v340
    %357 = vst [vmem:[#allocation2 + $0x48] sm:$0xff] %v341
    %358 = vst [vmem:[#allocation2 + $0x50] sm:$0xff] %v342
    %359 = vst [vmem:[#allocation2 + $0x58] sm:$0xff] %v343
    %360 = vst [vmem:[#allocation2 + $0x60] sm:$0xff] %v344
    %361 = vst [vmem:[#allocation2 + $0x68] sm:$0xff] %v345
    %362 = vst [vmem:[#allocation2 + $0x70] sm:$0xff] %v346
    %363 = vst [vmem:[#allocation2 + $0x78] sm:$0xff] %v347
    %v364 = vld [vmem:[#allocation3] sm:$0xff]
    %v365 = vld [vmem:[#allocation3 + $0x8] sm:$0xff]
    %v366 = vld [vmem:[#allocation3 + $0x10] sm:$0xff]
    %v367 = vld [vmem:[#allocation3 + $0x18] sm:$0xff]
    %v368 = vld [vmem:[#allocation3 + $0x20] sm:$0xff]
    %v369 = vld [vmem:[#allocation3 + $0x28] sm:$0xff]
    %v370 = vld [vmem:[#allocation3 + $0x30] sm:$0xff]
    %v371 = vld [vmem:[#allocation3 + $0x38] sm:$0xff]
    %v372 = vld [vmem:[#allocation3 + $0x40] sm:$0xff]
    %v373 = vld [vmem:[#allocation3 + $0x48] sm:$0xff]
    %v374 = vld [vmem:[#allocation3 + $0x50] sm:$0xff]
    %v375 = vld [vmem:[#allocation3 + $0x58] sm:$0xff]
    %v376 = vld [vmem:[#allocation3 + $0x60] sm:$0xff]
    %v377 = vld [vmem:[#allocation3 + $0x68] sm:$0xff]
    %v378 = vld [vmem:[#allocation3 + $0x70] sm:$0xff]
    %v379 = vld [vmem:[#allocation3 + $0x78] sm:$0xff]
    %v380 = vunpack.c.l.bf16 %v139
    %v381 = vunpack.c.l.bf16 %v140
    %v382 = vunpack.c.l.bf16 %v141
    %v383 = vunpack.c.l.bf16 %v142
    %v384 = vunpack.c.l.bf16 %v143
    %v385 = vunpack.c.l.bf16 %v144
    %v386 = vunpack.c.l.bf16 %v145
    %v387 = vunpack.c.l.bf16 %v146
    %v388 = vunpack.c.l.bf16 %v147
    %v389 = vunpack.c.l.bf16 %v148
    %v390 = vunpack.c.l.bf16 %v149
    %v391 = vunpack.c.l.bf16 %v150
    %v392 = vunpack.c.l.bf16 %v151
    %v393 = vunpack.c.l.bf16 %v152
    %v394 = vunpack.c.l.bf16 %v153
    %v395 = vunpack.c.l.bf16 %v154
    %396 = vadd.xlane.f32.xlu0 %v380
    %v397 = vpop.xlane.xlu0 %396
    %398 = vadd.xlane.f32.xlu0 %v381
    %v399 = vpop.xlane.xlu0 %398
    %400 = vadd.xlane.f32.xlu0 %v382
    %v401 = vpop.xlane.xlu0 %400
    %402 = vadd.xlane.f32.xlu0 %v383
    %v403 = vpop.xlane.xlu0 %402
    %404 = vadd.xlane.f32.xlu0 %v384
    %v405 = vpop.xlane.xlu0 %404
    %406 = vadd.xlane.f32.xlu0 %v385
    %v407 = vpop.xlane.xlu0 %406
    %408 = vadd.xlane.f32.xlu0 %v386
    %v409 = vpop.xlane.xlu0 %408
    %410 = vadd.xlane.f32.xlu0 %v387
    %v411 = vpop.xlane.xlu0 %410
    %412 = vadd.xlane.f32.xlu0 %v388
    %v413 = vpop.xlane.xlu0 %412
    %414 = vadd.xlane.f32.xlu0 %v389
    %v415 = vpop.xlane.xlu0 %414
    %416 = vadd.xlane.f32.xlu0 %v390
    %v417 = vpop.xlane.xlu0 %416
    %418 = vadd.xlane.f32.xlu0 %v391
    %v419 = vpop.xlane.xlu0 %418
    %420 = vadd.xlane.f32.xlu0 %v392
    %v421 = vpop.xlane.xlu0 %420
    %422 = vadd.xlane.f32.xlu0 %v393
    %v423 = vpop.xlane.xlu0 %422
    %424 = vadd.xlane.f32.xlu0 %v394
    %v425 = vpop.xlane.xlu0 %424
    %426 = vadd.xlane.f32.xlu0 %v395
    %v427 = vpop.xlane.xlu0 %426
    %v428 = vadd.f32 %v364, %v397
    %v429 = vadd.f32 %v365, %v399
    %v430 = vadd.f32 %v366, %v401
    %v431 = vadd.f32 %v367, %v403
    %v432 = vadd.f32 %v368, %v405
    %v433 = vadd.f32 %v369, %v407
    %v434 = vadd.f32 %v370, %v409
    %v435 = vadd.f32 %v371, %v411
    %v436 = vadd.f32 %v372, %v413
    %v437 = vadd.f32 %v373, %v415
    %v438 = vadd.f32 %v374, %v417
    %v439 = vadd.f32 %v375, %v419
    %v440 = vadd.f32 %v376, %v421
    %v441 = vadd.f32 %v377, %v423
    %v442 = vadd.f32 %v378, %v425
    %v443 = vadd.f32 %v379, %v427
    %vm444 = vcmask 7168
    %445 = vst.msk [vmem:[#allocation3] sm:$0xff] %vm444, %v428
    %446 = vst.msk [vmem:[#allocation3 + $0x8] sm:$0xff] %vm444, %v429
    %447 = vst.msk [vmem:[#allocation3 + $0x10] sm:$0xff] %vm444, %v430
    %448 = vst.msk [vmem:[#allocation3 + $0x18] sm:$0xff] %vm444, %v431
    %449 = vst.msk [vmem:[#allocation3 + $0x20] sm:$0xff] %vm444, %v432
    %450 = vst.msk [vmem:[#allocation3 + $0x28] sm:$0xff] %vm444, %v433
    %451 = vst.msk [vmem:[#allocation3 + $0x30] sm:$0xff] %vm444, %v434
    %452 = vst.msk [vmem:[#allocation3 + $0x38] sm:$0xff] %vm444, %v435
    %453 = vst.msk [vmem:[#allocation3 + $0x40] sm:$0xff] %vm444, %v436
    %454 = vst.msk [vmem:[#allocation3 + $0x48] sm:$0xff] %vm444, %v437
    %455 = vst.msk [vmem:[#allocation3 + $0x50] sm:$0xff] %vm444, %v438
    %456 = vst.msk [vmem:[#allocation3 + $0x58] sm:$0xff] %vm444, %v439
    %457 = vst.msk [vmem:[#allocation3 + $0x60] sm:$0xff] %vm444, %v440
    %458 = vst.msk [vmem:[#allocation3 + $0x68] sm:$0xff] %vm444, %v441
    %459 = vst.msk [vmem:[#allocation3 + $0x70] sm:$0xff] %vm444, %v442
    %460 = vst.msk [vmem:[#allocation3 + $0x78] sm:$0xff] %vm444, %v443
    // Predicated region
    $region50: #{tpu_custom_call.1} parent=1 // pred_check
      %p461 = pneg %p102
    $region51: #{tpu_custom_call.1} parent=1 // pred_check_branch
      %463 = sbr.rel (%p461) target = $region53
    $region52: #{tpu_custom_call.1} parent=1 // pred_region
      %v464 = vld [vmem:[#allocation3] sm:$0xff]
      %v465 = vld [vmem:[#allocation3 + $0x8] sm:$0xff]
      %v466 = vld [vmem:[#allocation3 + $0x10] sm:$0xff]
      %v467 = vld [vmem:[#allocation3 + $0x18] sm:$0xff]
      %v468 = vld [vmem:[#allocation3 + $0x20] sm:$0xff]
      %v469 = vld [vmem:[#allocation3 + $0x28] sm:$0xff]
      %v470 = vld [vmem:[#allocation3 + $0x30] sm:$0xff]
      %v471 = vld [vmem:[#allocation3 + $0x38] sm:$0xff]
      %v472 = vld [vmem:[#allocation3 + $0x40] sm:$0xff]
      %v473 = vld [vmem:[#allocation3 + $0x48] sm:$0xff]
      %v474 = vld [vmem:[#allocation3 + $0x50] sm:$0xff]
      %v475 = vld [vmem:[#allocation3 + $0x58] sm:$0xff]
      %v476 = vld [vmem:[#allocation3 + $0x60] sm:$0xff]
      %v477 = vld [vmem:[#allocation3 + $0x68] sm:$0xff]
      %v478 = vld [vmem:[#allocation3 + $0x70] sm:$0xff]
      %v479 = vld [vmem:[#allocation3 + $0x78] sm:$0xff]
      %v480 = vmax.f32 %v464, 1.0
      %v481 = vmax.f32 %v465, 1.0
      %v482 = vmax.f32 %v466, 1.0
      %v483 = vmax.f32 %v467, 1.0
      %v484 = vmax.f32 %v468, 1.0
      %v485 = vmax.f32 %v469, 1.0
      %v486 = vmax.f32 %v470, 1.0
      %v487 = vmax.f32 %v471, 1.0
      %v488 = vmax.f32 %v472, 1.0
      %v489 = vmax.f32 %v473, 1.0
      %v490 = vmax.f32 %v474, 1.0
      %v491 = vmax.f32 %v475, 1.0
      %v492 = vmax.f32 %v476, 1.0
      %v493 = vmax.f32 %v477, 1.0
      %v494 = vmax.f32 %v478, 1.0
      %v495 = vmax.f32 %v479, 1.0
      %v496 = vrcp.pop %v480
      %v497 = vmul.f32 %v480, %v496
      %v498 = vsub.f32 1.0, %v497
      %v499 = vmul.f32 %v496, %v498
      %v500 = vadd.f32 %v496, %v499
      %vm501 = vweird.f32 %v480
      %vm502 = vweird.f32 %v496
      %vm503 = vmor %vm501, %vm502
      %v504 = vsel %vm503, %v496, %v500
      %v505 = vand.u32 2147483647, %v480
      %vm506 = vcmp.eq.f32.partialorder %v505, 8.507059e+37
      %v507 = vand.u32 %v480, 2147483648
      %v508 = vor.u32 1.1754944e-38, %v507
      %v509 = vsel %vm506, %v508, %v504
      %v510 = vmul.f32 1.0, %v509
      %v511 = vrcp.pop %v481
      %v512 = vmul.f32 %v481, %v511
      %v513 = vsub.f32 1.0, %v512
      %v514 = vmul.f32 %v511, %v513
      %v515 = vadd.f32 %v511, %v514
      %vm516 = vweird.f32 %v481
      %vm517 = vweird.f32 %v511
      %vm518 = vmor %vm516, %vm517
      %v519 = vsel %vm518, %v511, %v515
      %v520 = vand.u32 2147483647, %v481
      %vm521 = vcmp.eq.f32.partialorder %v520, 8.507059e+37
      %v522 = vand.u32 %v481, 2147483648
      %v523 = vor.u32 1.1754944e-38, %v522
      %v524 = vsel %vm521, %v523, %v519
      %v525 = vmul.f32 1.0, %v524
      %v526 = vrcp.pop %v482
      %v527 = vmul.f32 %v482, %v526
      %v528 = vsub.f32 1.0, %v527
      %v529 = vmul.f32 %v526, %v528
      %v530 = vadd.f32 %v526, %v529
      %vm531 = vweird.f32 %v482
      %vm532 = vweird.f32 %v526
      %vm533 = vmor %vm531, %vm532
      %v534 = vsel %vm533, %v526, %v530
      %v535 = vand.u32 2147483647, %v482
      %vm536 = vcmp.eq.f32.partialorder %v535, 8.507059e+37
      %v537 = vand.u32 %v482, 2147483648
      %v538 = vor.u32 1.1754944e-38, %v537
      %v539 = vsel %vm536, %v538, %v534
      %v540 = vmul.f32 1.0, %v539
      %v541 = vrcp.pop %v483
      %v542 = vmul.f32 %v483, %v541
      %v543 = vsub.f32 1.0, %v542
      %v544 = vmul.f32 %v541, %v543
      %v545 = vadd.f32 %v541, %v544
      %vm546 = vweird.f32 %v483
      %vm547 = vweird.f32 %v541
      %vm548 = vmor %vm546, %vm547
      %v549 = vsel %vm548, %v541, %v545
      %v550 = vand.u32 2147483647, %v483
      %vm551 = vcmp.eq.f32.partialorder %v550, 8.507059e+37
      %v552 = vand.u32 %v483, 2147483648
      %v553 = vor.u32 1.1754944e-38, %v552
      %v554 = vsel %vm551, %v553, %v549
      %v555 = vmul.f32 1.0, %v554
      %v556 = vrcp.pop %v484
      %v557 = vmul.f32 %v484, %v556
      %v558 = vsub.f32 1.0, %v557
      %v559 = vmul.f32 %v556, %v558
      %v560 = vadd.f32 %v556, %v559
      %vm561 = vweird.f32 %v484
      %vm562 = vweird.f32 %v556
      %vm563 = vmor %vm561, %vm562
      %v564 = vsel %vm563, %v556, %v560
      %v565 = vand.u32 2147483647, %v484
      %vm566 = vcmp.eq.f32.partialorder %v565, 8.507059e+37
      %v567 = vand.u32 %v484, 2147483648
      %v568 = vor.u32 1.1754944e-38, %v567
      %v569 = vsel %vm566, %v568, %v564
      %v570 = vmul.f32 1.0, %v569
      %v571 = vrcp.pop %v485
      %v572 = vmul.f32 %v485, %v571
      %v573 = vsub.f32 1.0, %v572
      %v574 = vmul.f32 %v571, %v573
      %v575 = vadd.f32 %v571, %v574
      %vm576 = vweird.f32 %v485
      %vm577 = vweird.f32 %v571
      %vm578 = vmor %vm576, %vm577
      %v579 = vsel %vm578, %v571, %v575
      %v580 = vand.u32 2147483647, %v485
      %vm581 = vcmp.eq.f32.partialorder %v580, 8.507059e+37
      %v582 = vand.u32 %v485, 2147483648
      %v583 = vor.u32 1.1754944e-38, %v582
      %v584 = vsel %vm581, %v583, %v579
      %v585 = vmul.f32 1.0, %v584
      %v586 = vrcp.pop %v486
      %v587 = vmul.f32 %v486, %v586
      %v588 = vsub.f32 1.0, %v587
      %v589 = vmul.f32 %v586, %v588
      %v590 = vadd.f32 %v586, %v589
      %vm591 = vweird.f32 %v486
      %vm592 = vweird.f32 %v586
      %vm593 = vmor %vm591, %vm592
      %v594 = vsel %vm593, %v586, %v590
      %v595 = vand.u32 2147483647, %v486
      %vm596 = vcmp.eq.f32.partialorder %v595, 8.507059e+37
      %v597 = vand.u32 %v486, 2147483648
      %v598 = vor.u32 1.1754944e-38, %v597
      %v599 = vsel %vm596, %v598, %v594
      %v600 = vmul.f32 1.0, %v599
      %v601 = vrcp.pop %v487
      %v602 = vmul.f32 %v487, %v601
      %v603 = vsub.f32 1.0, %v602
      %v604 = vmul.f32 %v601, %v603
      %v605 = vadd.f32 %v601, %v604
      %vm606 = vweird.f32 %v487
      %vm607 = vweird.f32 %v601
      %vm608 = vmor %vm606, %vm607
      %v609 = vsel %vm608, %v601, %v605
      %v610 = vand.u32 2147483647, %v487
      %vm611 = vcmp.eq.f32.partialorder %v610, 8.507059e+37
      %v612 = vand.u32 %v487, 2147483648
      %v613 = vor.u32 1.1754944e-38, %v612
      %v614 = vsel %vm611, %v613, %v609
      %v615 = vmul.f32 1.0, %v614
      %v616 = vrcp.pop %v488
      %v617 = vmul.f32 %v488, %v616
      %v618 = vsub.f32 1.0, %v617
      %v619 = vmul.f32 %v616, %v618
      %v620 = vadd.f32 %v616, %v619
      %vm621 = vweird.f32 %v488
      %vm622 = vweird.f32 %v616
      %vm623 = vmor %vm621, %vm622
      %v624 = vsel %vm623, %v616, %v620
      %v625 = vand.u32 2147483647, %v488
      %vm626 = vcmp.eq.f32.partialorder %v625, 8.507059e+37
      %v627 = vand.u32 %v488, 2147483648
      %v628 = vor.u32 1.1754944e-38, %v627
      %v629 = vsel %vm626, %v628, %v624
      %v630 = vmul.f32 1.0, %v629
      %v631 = vrcp.pop %v489
      %v632 = vmul.f32 %v489, %v631
      %v633 = vsub.f32 1.0, %v632
      %v634 = vmul.f32 %v631, %v633
      %v635 = vadd.f32 %v631, %v634
      %vm636 = vweird.f32 %v489
      %vm637 = vweird.f32 %v631
      %vm638 = vmor %vm636, %vm637
      %v639 = vsel %vm638, %v631, %v635
      %v640 = vand.u32 2147483647, %v489
      %vm641 = vcmp.eq.f32.partialorder %v640, 8.507059e+37
      %v642 = vand.u32 %v489, 2147483648
      %v643 = vor.u32 1.1754944e-38, %v642
      %v644 = vsel %vm641, %v643, %v639
      %v645 = vmul.f32 1.0, %v644
      %v646 = vrcp.pop %v490
      %v647 = vmul.f32 %v490, %v646
      %v648 = vsub.f32 1.0, %v647
      %v649 = vmul.f32 %v646, %v648
      %v650 = vadd.f32 %v646, %v649
      %vm651 = vweird.f32 %v490
      %vm652 = vweird.f32 %v646
      %vm653 = vmor %vm651, %vm652
      %v654 = vsel %vm653, %v646, %v650
      %v655 = vand.u32 2147483647, %v490
      %vm656 = vcmp.eq.f32.partialorder %v655, 8.507059e+37
      %v657 = vand.u32 %v490, 2147483648
      %v658 = vor.u32 1.1754944e-38, %v657
      %v659 = vsel %vm656, %v658, %v654
      %v660 = vmul.f32 1.0, %v659
      %v661 = vrcp.pop %v491
      %v662 = vmul.f32 %v491, %v661
      %v663 = vsub.f32 1.0, %v662
      %v664 = vmul.f32 %v661, %v663
      %v665 = vadd.f32 %v661, %v664
      %vm666 = vweird.f32 %v491
      %vm667 = vweird.f32 %v661
      %vm668 = vmor %vm666, %vm667
      %v669 = vsel %vm668, %v661, %v665
      %v670 = vand.u32 2147483647, %v491
      %vm671 = vcmp.eq.f32.partialorder %v670, 8.507059e+37
      %v672 = vand.u32 %v491, 2147483648
      %v673 = vor.u32 1.1754944e-38, %v672
      %v674 = vsel %vm671, %v673, %v669
      %v675 = vmul.f32 1.0, %v674
      %v676 = vrcp.pop %v492
      %v677 = vmul.f32 %v492, %v676
      %v678 = vsub.f32 1.0, %v677
      %v679 = vmul.f32 %v676, %v678
      %v680 = vadd.f32 %v676, %v679
      %vm681 = vweird.f32 %v492
      %vm682 = vweird.f32 %v676
      %vm683 = vmor %vm681, %vm682
      %v684 = vsel %vm683, %v676, %v680
      %v685 = vand.u32 2147483647, %v492
      %vm686 = vcmp.eq.f32.partialorder %v685, 8.507059e+37
      %v687 = vand.u32 %v492, 2147483648
      %v688 = vor.u32 1.1754944e-38, %v687
      %v689 = vsel %vm686, %v688, %v684
      %v690 = vmul.f32 1.0, %v689
      %v691 = vrcp.pop %v493
      %v692 = vmul.f32 %v493, %v691
      %v693 = vsub.f32 1.0, %v692
      %v694 = vmul.f32 %v691, %v693
      %v695 = vadd.f32 %v691, %v694
      %vm696 = vweird.f32 %v493
      %vm697 = vweird.f32 %v691
      %vm698 = vmor %vm696, %vm697
      %v699 = vsel %vm698, %v691, %v695
      %v700 = vand.u32 2147483647, %v493
      %vm701 = vcmp.eq.f32.partialorder %v700, 8.507059e+37
      %v702 = vand.u32 %v493, 2147483648
      %v703 = vor.u32 1.1754944e-38, %v702
      %v704 = vsel %vm701, %v703, %v699
      %v705 = vmul.f32 1.0, %v704
      %v706 = vrcp.pop %v494
      %v707 = vmul.f32 %v494, %v706
      %v708 = vsub.f32 1.0, %v707
      %v709 = vmul.f32 %v706, %v708
      %v710 = vadd.f32 %v706, %v709
      %vm711 = vweird.f32 %v494
      %vm712 = vweird.f32 %v706
      %vm713 = vmor %vm711, %vm712
      %v714 = vsel %vm713, %v706, %v710
      %v715 = vand.u32 2147483647, %v494
      %vm716 = vcmp.eq.f32.partialorder %v715, 8.507059e+37
      %v717 = vand.u32 %v494, 2147483648
      %v718 = vor.u32 1.1754944e-38, %v717
      %v719 = vsel %vm716, %v718, %v714
      %v720 = vmul.f32 1.0, %v719
      %v721 = vrcp.pop %v495
      %v722 = vmul.f32 %v495, %v721
      %v723 = vsub.f32 1.0, %v722
      %v724 = vmul.f32 %v721, %v723
      %v725 = vadd.f32 %v721, %v724
      %vm726 = vweird.f32 %v495
      %vm727 = vweird.f32 %v721
      %vm728 = vmor %vm726, %vm727
      %v729 = vsel %vm728, %v721, %v725
      %v730 = vand.u32 2147483647, %v495
      %vm731 = vcmp.eq.f32.partialorder %v730, 8.507059e+37
      %v732 = vand.u32 %v495, 2147483648
      %v733 = vor.u32 1.1754944e-38, %v732
      %v734 = vsel %vm731, %v733, %v729
      %v735 = vmul.f32 1.0, %v734
      %v736 = vld [vmem:[#allocation2] sm:$0xff]
      %v737 = vld [vmem:[#allocation2 + $0x8] sm:$0xff]
      %v738 = vld [vmem:[#allocation2 + $0x10] sm:$0xff]
      %v739 = vld [vmem:[#allocation2 + $0x18] sm:$0xff]
      %v740 = vld [vmem:[#allocation2 + $0x20] sm:$0xff]
      %v741 = vld [vmem:[#allocation2 + $0x28] sm:$0xff]
      %v742 = vld [vmem:[#allocation2 + $0x30] sm:$0xff]
      %v743 = vld [vmem:[#allocation2 + $0x38] sm:$0xff]
      %v744 = vld [vmem:[#allocation2 + $0x40] sm:$0xff]
      %v745 = vld [vmem:[#allocation2 + $0x48] sm:$0xff]
      %v746 = vld [vmem:[#allocation2 + $0x50] sm:$0xff]
      %v747 = vld [vmem:[#allocation2 + $0x58] sm:$0xff]
      %v748 = vld [vmem:[#allocation2 + $0x60] sm:$0xff]
      %v749 = vld [vmem:[#allocation2 + $0x68] sm:$0xff]
      %v750 = vld [vmem:[#allocation2 + $0x70] sm:$0xff]
      %v751 = vld [vmem:[#allocation2 + $0x78] sm:$0xff]
      %753 = vset.pattern.permute.xlu0 0
      %754 = vperm.xlu0 %753, %v510
      %v755 = vpop.permute.xlu0 %754
      %758 = vset.pattern.permute.xlu0 0
      %759 = vperm.xlu0 %758, %v525
      %v760 = vpop.permute.xlu0 %759
      %763 = vset.pattern.permute.xlu0 0
      %764 = vperm.xlu0 %763, %v540
      %v765 = vpop.permute.xlu0 %764
      %768 = vset.pattern.permute.xlu0 0
      %769 = vperm.xlu0 %768, %v555
      %v770 = vpop.permute.xlu0 %769
      %773 = vset.pattern.permute.xlu0 0
      %774 = vperm.xlu0 %773, %v570
      %v775 = vpop.permute.xlu0 %774
      %778 = vset.pattern.permute.xlu0 0
      %779 = vperm.xlu0 %778, %v585
      %v780 = vpop.permute.xlu0 %779
      %783 = vset.pattern.permute.xlu0 0
      %784 = vperm.xlu0 %783, %v600
      %v785 = vpop.permute.xlu0 %784
      %788 = vset.pattern.permute.xlu0 0
      %789 = vperm.xlu0 %788, %v615
      %v790 = vpop.permute.xlu0 %789
      %793 = vset.pattern.permute.xlu0 0
      %794 = vperm.xlu0 %793, %v630
      %v795 = vpop.permute.xlu0 %794
      %798 = vset.pattern.permute.xlu0 0
      %799 = vperm.xlu0 %798, %v645
      %v800 = vpop.permute.xlu0 %799
      %803 = vset.pattern.permute.xlu0 0
      %804 = vperm.xlu0 %803, %v660
      %v805 = vpop.permute.xlu0 %804
      %808 = vset.pattern.permute.xlu0 0
      %809 = vperm.xlu0 %808, %v675
      %v810 = vpop.permute.xlu0 %809
      %813 = vset.pattern.permute.xlu0 0
      %814 = vperm.xlu0 %813, %v690
      %v815 = vpop.permute.xlu0 %814
      %818 = vset.pattern.permute.xlu0 0
      %819 = vperm.xlu0 %818, %v705
      %v820 = vpop.permute.xlu0 %819
      %823 = vset.pattern.permute.xlu0 0
      %824 = vperm.xlu0 %823, %v720
      %v825 = vpop.permute.xlu0 %824
      %828 = vset.pattern.permute.xlu0 0
      %829 = vperm.xlu0 %828, %v735
      %v830 = vpop.permute.xlu0 %829
      %v832 = vmul.f32 %v736, %v755
      %v833 = vmul.f32 %v737, %v760
      %v834 = vmul.f32 %v738, %v765
      %v835 = vmul.f32 %v739, %v770
      %v836 = vmul.f32 %v740, %v775
      %v837 = vmul.f32 %v741, %v780
      %v838 = vmul.f32 %v742, %v785
      %v839 = vmul.f32 %v743, %v790
      %v840 = vmul.f32 %v744, %v795
      %v841 = vmul.f32 %v745, %v800
      %v842 = vmul.f32 %v746, %v805
      %v843 = vmul.f32 %v747, %v810
      %v844 = vmul.f32 %v748, %v815
      %v845 = vmul.f32 %v749, %v820
      %v846 = vmul.f32 %v750, %v825
      %v847 = vmul.f32 %v751, %v830
      %v848 = vld [vmem:[#allocation4] sm:$0xf]
      %v849 = vld [vmem:[#allocation4 + $0x4] sm:$0xf]
      %v850 = vld [vmem:[#allocation4 + $0x8] sm:$0xf]
      %v851 = vld [vmem:[#allocation4 + $0xc] sm:$0xf]
      %v852 = vld [vmem:[#allocation4 + $0x10] sm:$0xf]
      %v853 = vld [vmem:[#allocation4 + $0x14] sm:$0xf]
      %v854 = vld [vmem:[#allocation4 + $0x18] sm:$0xf]
      %v855 = vld [vmem:[#allocation4 + $0x1c] sm:$0xf]
      %v856 = vld [vmem:[#allocation4 + $0x20] sm:$0xf]
      %v857 = vld [vmem:[#allocation4 + $0x24] sm:$0xf]
      %v858 = vld [vmem:[#allocation4 + $0x28] sm:$0xf]
      %v859 = vld [vmem:[#allocation4 + $0x2c] sm:$0xf]
      %v860 = vld [vmem:[#allocation4 + $0x30] sm:$0xf]
      %v861 = vld [vmem:[#allocation4 + $0x34] sm:$0xf]
      %v862 = vld [vmem:[#allocation4 + $0x38] sm:$0xf]
      %v863 = vld [vmem:[#allocation4 + $0x3c] sm:$0xf]
      %v864 = vunpack.c.l.bf16 %v848
      %v865 = vunpack.c.l.bf16 %v849
      %v866 = vunpack.c.l.bf16 %v850
      %v867 = vunpack.c.l.bf16 %v851
      %v868 = vunpack.c.l.bf16 %v852
      %v869 = vunpack.c.l.bf16 %v853
      %v870 = vunpack.c.l.bf16 %v854
      %v871 = vunpack.c.l.bf16 %v855
      %v872 = vunpack.c.l.bf16 %v856
      %v873 = vunpack.c.l.bf16 %v857
      %v874 = vunpack.c.l.bf16 %v858
      %v875 = vunpack.c.l.bf16 %v859
      %v876 = vunpack.c.l.bf16 %v860
      %v877 = vunpack.c.l.bf16 %v861
      %v878 = vunpack.c.l.bf16 %v862
      %v879 = vunpack.c.l.bf16 %v863
      %v880 = vld [vmem:[#allocation10] sm:$0xff]
      %v881 = vld [vmem:[#allocation10 + $0x8] sm:$0xff]
      %v882 = vld [vmem:[#allocation10 + $0x10] sm:$0xff]
      %v883 = vld [vmem:[#allocation10 + $0x18] sm:$0xff]
      %v884 = vld [vmem:[#allocation10 + $0x20] sm:$0xff]
      %v885 = vld [vmem:[#allocation10 + $0x28] sm:$0xff]
      %v886 = vld [vmem:[#allocation10 + $0x30] sm:$0xff]
      %v887 = vld [vmem:[#allocation10 + $0x38] sm:$0xff]
      %v888 = vld [vmem:[#allocation10 + $0x40] sm:$0xff]
      %v889 = vld [vmem:[#allocation10 + $0x48] sm:$0xff]
      %v890 = vld [vmem:[#allocation10 + $0x50] sm:$0xff]
      %v891 = vld [vmem:[#allocation10 + $0x58] sm:$0xff]
      %v892 = vld [vmem:[#allocation10 + $0x60] sm:$0xff]
      %v893 = vld [vmem:[#allocation10 + $0x68] sm:$0xff]
      %v894 = vld [vmem:[#allocation10 + $0x70] sm:$0xff]
      %v895 = vld [vmem:[#allocation10 + $0x78] sm:$0xff]
      %v896 = vld [vmem:[#allocation12] sm:$0xff]
      %v897 = vld [vmem:[#allocation12 + $0x8] sm:$0xff]
      %v898 = vld [vmem:[#allocation12 + $0x10] sm:$0xff]
      %v899 = vld [vmem:[#allocation12 + $0x18] sm:$0xff]
      %v900 = vld [vmem:[#allocation12 + $0x20] sm:$0xff]
      %v901 = vld [vmem:[#allocation12 + $0x28] sm:$0xff]
      %v902 = vld [vmem:[#allocation12 + $0x30] sm:$0xff]
      %v903 = vld [vmem:[#allocation12 + $0x38] sm:$0xff]
      %v904 = vld [vmem:[#allocation12 + $0x40] sm:$0xff]
      %v905 = vld [vmem:[#allocation12 + $0x48] sm:$0xff]
      %v906 = vld [vmem:[#allocation12 + $0x50] sm:$0xff]
      %v907 = vld [vmem:[#allocation12 + $0x58] sm:$0xff]
      %v908 = vld [vmem:[#allocation12 + $0x60] sm:$0xff]
      %v909 = vld [vmem:[#allocation12 + $0x68] sm:$0xff]
      %v910 = vld [vmem:[#allocation12 + $0x70] sm:$0xff]
      %v911 = vld [vmem:[#allocation12 + $0x78] sm:$0xff]
      %912 = vmatpush.msra.mxu0 %v911
      %913 = vmatpush.msra.mxu0 %v910
      %914 = vmatpush.msra.mxu0 %v909
      %915 = vmatpush.msra.mxu0 %v908
      %916 = vmatpush.msra.mxu0 %v907
      %917 = vmatpush.msra.mxu0 %v906
      %918 = vmatpush.msra.mxu0 %v905
      %919 = vmatpush.msra.mxu0 %v904
      %920 = vmatpush.msra.mxu0 %v903
      %921 = vmatpush.msra.mxu0 %v902
      %922 = vmatpush.msra.mxu0 %v901
      %923 = vmatpush.msra.mxu0 %v900
      %924 = vmatpush.msra.mxu0 %v899
      %925 = vmatpush.msra.mxu0 %v898
      %926 = vmatpush.msra.mxu0 %v897
      %927 = vmatpush.msra.mxu0 %v896
      %928 = vmatmul.f32.gmra.mxu0 %v832
      %v929 = vpop.f32.mrf.mxu0
      %v930 = vadd.f32 0.0, %v929
      %931 = vmatmul.f32.gmra.mxu0 %v833
      %v932 = vpop.f32.mrf.mxu0
      %v933 = vadd.f32 0.0, %v932
      %934 = vmatmul.f32.gmra.mxu0 %v834
      %v935 = vpop.f32.mrf.mxu0
      %v936 = vadd.f32 0.0, %v935
      %937 = vmatmul.f32.gmra.mxu0 %v835
      %v938 = vpop.f32.mrf.mxu0
      %v939 = vadd.f32 0.0, %v938
      %940 = vmatmul.f32.gmra.mxu0 %v836
      %v941 = vpop.f32.mrf.mxu0
      %v942 = vadd.f32 0.0, %v941
      %943 = vmatmul.f32.gmra.mxu0 %v837
      %v944 = vpop.f32.mrf.mxu0
      %v945 = vadd.f32 0.0, %v944
      %946 = vmatmul.f32.gmra.mxu0 %v838
      %v947 = vpop.f32.mrf.mxu0
      %v948 = vadd.f32 0.0, %v947
      %949 = vmatmul.f32.gmra.mxu0 %v839
      %v950 = vpop.f32.mrf.mxu0
      %v951 = vadd.f32 0.0, %v950
      %952 = vmatmul.f32.gmra.mxu0 %v840
      %v953 = vpop.f32.mrf.mxu0
      %v954 = vadd.f32 0.0, %v953
      %955 = vmatmul.f32.gmra.mxu0 %v841
      %v956 = vpop.f32.mrf.mxu0
      %v957 = vadd.f32 0.0, %v956
      %958 = vmatmul.f32.gmra.mxu0 %v842
      %v959 = vpop.f32.mrf.mxu0
      %v960 = vadd.f32 0.0, %v959
      %961 = vmatmul.f32.gmra.mxu0 %v843
      %v962 = vpop.f32.mrf.mxu0
      %v963 = vadd.f32 0.0, %v962
      %964 = vmatmul.f32.gmra.mxu0 %v844
      %v965 = vpop.f32.mrf.mxu0
      %v966 = vadd.f32 0.0, %v965
      %967 = vmatmul.f32.gmra.mxu0 %v845
      %v968 = vpop.f32.mrf.mxu0
      %v969 = vadd.f32 0.0, %v968
      %970 = vmatmul.f32.gmra.mxu0 %v846
      %v971 = vpop.f32.mrf.mxu0
      %v972 = vadd.f32 0.0, %v971
      %973 = vmatmul.f32.gmra.mxu0 %v847
      %v974 = vpop.f32.mrf.mxu0
      %v975 = vadd.f32 0.0, %v974
      %976 = vdwg.mxu0
      %977 = vmatpush.msra.mxu0 %v895
      %978 = vmatpush.msra.mxu0 %v894
      %979 = vmatpush.msra.mxu0 %v893
      %980 = vmatpush.msra.mxu0 %v892
      %981 = vmatpush.msra.mxu0 %v891
      %982 = vmatpush.msra.mxu0 %v890
      %983 = vmatpush.msra.mxu0 %v889
      %984 = vmatpush.msra.mxu0 %v888
      %985 = vmatpush.msra.mxu0 %v887
      %986 = vmatpush.msra.mxu0 %v886
      %987 = vmatpush.msra.mxu0 %v885
      %988 = vmatpush.msra.mxu0 %v884
      %989 = vmatpush.msra.mxu0 %v883
      %990 = vmatpush.msra.mxu0 %v882
      %991 = vmatpush.msra.mxu0 %v881
      %992 = vmatpush.msra.mxu0 %v880
      %993 = vmatmul.f32.gmra.mxu0 %v864
      %v994 = vpop.f32.mrf.mxu0
      %v995 = vadd.f32 %v930, %v994
      %996 = vmatmul.f32.gmra.mxu0 %v865
      %v997 = vpop.f32.mrf.mxu0
      %v998 = vadd.f32 %v933, %v997
      %999 = vmatmul.f32.gmra.mxu0 %v866
      %v1000 = vpop.f32.mrf.mxu0
      %v1001 = vadd.f32 %v936, %v1000
      %1002 = vmatmul.f32.gmra.mxu0 %v867
      %v1003 = vpop.f32.mrf.mxu0
      %v1004 = vadd.f32 %v939, %v1003
      %1005 = vmatmul.f32.gmra.mxu0 %v868
      %v1006 = vpop.f32.mrf.mxu0
      %v1007 = vadd.f32 %v942, %v1006
      %1008 = vmatmul.f32.gmra.mxu0 %v869
      %v1009 = vpop.f32.mrf.mxu0
      %v1010 = vadd.f32 %v945, %v1009
      %1011 = vmatmul.f32.gmra.mxu0 %v870
      %v1012 = vpop.f32.mrf.mxu0
      %v1013 = vadd.f32 %v948, %v1012
      %1014 = vmatmul.f32.gmra.mxu0 %v871
      %v1015 = vpop.f32.mrf.mxu0
      %v1016 = vadd.f32 %v951, %v1015
      %1017 = vmatmul.f32.gmra.mxu0 %v872
      %v1018 = vpop.f32.mrf.mxu0
      %v1019 = vadd.f32 %v954, %v1018
      %1020 = vmatmul.f32.gmra.mxu0 %v873
      %v1021 = vpop.f32.mrf.mxu0
      %v1022 = vadd.f32 %v957, %v1021
      %1023 = vmatmul.f32.gmra.mxu0 %v874
      %v1024 = vpop.f32.mrf.mxu0
      %v1025 = vadd.f32 %v960, %v1024
      %1026 = vmatmul.f32.gmra.mxu0 %v875
      %v1027 = vpop.f32.mrf.mxu0
      %v1028 = vadd.f32 %v963, %v1027
      %1029 = vmatmul.f32.gmra.mxu0 %v876
      %v1030 = vpop.f32.mrf.mxu0
      %v1031 = vadd.f32 %v966, %v1030
      %1032 = vmatmul.f32.gmra.mxu0 %v877
      %v1033 = vpop.f32.mrf.mxu0
      %v1034 = vadd.f32 %v969, %v1033
      %1035 = vmatmul.f32.gmra.mxu0 %v878
      %v1036 = vpop.f32.mrf.mxu0
      %v1037 = vadd.f32 %v972, %v1036
      %1038 = vmatmul.f32.gmra.mxu0 %v879
      %v1039 = vpop.f32.mrf.mxu0
      %v1040 = vadd.f32 %v975, %v1039
      %1041 = vdwg.mxu0
      %v1042 = vld [vmem:[%s5] sm:$0x1]
      %v1044 = vperm.slane %v1042, 0
      %v1046 = vadd.f32 %v995, %v1044
      %v1047 = vadd.f32 %v998, %v1044
      %v1048 = vadd.f32 %v1001, %v1044
      %v1049 = vadd.f32 %v1004, %v1044
      %v1050 = vadd.f32 %v1007, %v1044
      %v1051 = vadd.f32 %v1010, %v1044
      %v1052 = vadd.f32 %v1013, %v1044
      %v1053 = vadd.f32 %v1016, %v1044
      %v1054 = vadd.f32 %v1019, %v1044
      %v1055 = vadd.f32 %v1022, %v1044
      %v1056 = vadd.f32 %v1025, %v1044
      %v1057 = vadd.f32 %v1028, %v1044
      %v1058 = vadd.f32 %v1031, %v1044
      %v1059 = vadd.f32 %v1034, %v1044
      %v1060 = vadd.f32 %v1037, %v1044
      %v1061 = vadd.f32 %v1040, %v1044
      %v1062 = vmax.f32 %v1046, 0.0
      %v1063 = vmax.f32 %v1047, 0.0
      %v1064 = vmax.f32 %v1048, 0.0
      %v1065 = vmax.f32 %v1049, 0.0
      %v1066 = vmax.f32 %v1050, 0.0
      %v1067 = vmax.f32 %v1051, 0.0
      %v1068 = vmax.f32 %v1052, 0.0
      %v1069 = vmax.f32 %v1053, 0.0
      %v1070 = vmax.f32 %v1054, 0.0
      %v1071 = vmax.f32 %v1055, 0.0
      %v1072 = vmax.f32 %v1056, 0.0
      %v1073 = vmax.f32 %v1057, 0.0
      %v1074 = vmax.f32 %v1058, 0.0
      %v1075 = vmax.f32 %v1059, 0.0
      %v1076 = vmax.f32 %v1060, 0.0
      %v1077 = vmax.f32 %v1061, 0.0
      %v1078 = vpack.c.bf16 %v1062, %v1062
      %v1079 = vpack.c.bf16 %v1063, %v1063
      %v1080 = vpack.c.bf16 %v1064, %v1064
      %v1081 = vpack.c.bf16 %v1065, %v1065
      %v1082 = vpack.c.bf16 %v1066, %v1066
      %v1083 = vpack.c.bf16 %v1067, %v1067
      %v1084 = vpack.c.bf16 %v1068, %v1068
      %v1085 = vpack.c.bf16 %v1069, %v1069
      %v1086 = vpack.c.bf16 %v1070, %v1070
      %v1087 = vpack.c.bf16 %v1071, %v1071
      %v1088 = vpack.c.bf16 %v1072, %v1072
      %v1089 = vpack.c.bf16 %v1073, %v1073
      %v1090 = vpack.c.bf16 %v1074, %v1074
      %v1091 = vpack.c.bf16 %v1075, %v1075
      %v1092 = vpack.c.bf16 %v1076, %v1076
      %v1093 = vpack.c.bf16 %v1077, %v1077
      %1094 = vst [vmem:[#allocation13] sm:$0xf] %v1078
      %1095 = vst [vmem:[#allocation13 + $0x4] sm:$0xf] %v1079
      %1096 = vst [vmem:[#allocation13 + $0x8] sm:$0xf] %v1080
      %1097 = vst [vmem:[#allocation13 + $0xc] sm:$0xf] %v1081
      %1098 = vst [vmem:[#allocation13 + $0x10] sm:$0xf] %v1082
      %1099 = vst [vmem:[#allocation13 + $0x14] sm:$0xf] %v1083
      %1100 = vst [vmem:[#allocation13 + $0x18] sm:$0xf] %v1084
      %1101 = vst [vmem:[#allocation13 + $0x1c] sm:$0xf] %v1085
      %1102 = vst [vmem:[#allocation13 + $0x20] sm:$0xf] %v1086
      %1103 = vst [vmem:[#allocation13 + $0x24] sm:$0xf] %v1087
      %1104 = vst [vmem:[#allocation13 + $0x28] sm:$0xf] %v1088
      %1105 = vst [vmem:[#allocation13 + $0x2c] sm:$0xf] %v1089
      %1106 = vst [vmem:[#allocation13 + $0x30] sm:$0xf] %v1090
      %1107 = vst [vmem:[#allocation13 + $0x34] sm:$0xf] %v1091
      %1108 = vst [vmem:[#allocation13 + $0x38] sm:$0xf] %v1092
      %1109 = vst [vmem:[#allocation13 + $0x3c] sm:$0xf] %v1093
    $region53: #{tpu_custom_call.1} parent=1 // pred_fallthru
      _
    // Predicated region
    $region54: #{tpu_custom_call.1} parent=1 // pred_check
      _
    $region55: #{tpu_custom_call.1} parent=1 // pred_check_branch
      %1111 = sbr.rel (0) target = $region57
    $region56: #{tpu_custom_call.1} parent=1 // pred_region
      %1113 = vsyncadd [#allocation6], 0
      %s1114 = sshll.u32 [#allocation13], 4
      %s1115 = int_to_ptr.vmem [resolvable:$true] %s1114
      %s1116 = sshll.u32 %s6, 4
      %s1117 = int_to_ptr.hbm [resolvable:$true] %s1116
      %1122 = dma.vmem_to_hbm [thread:$0]  %s1115, 1024, %s1117, [#allocation6], 64, 64, 4
    $region57: #{tpu_custom_call.1} parent=1 // pred_fallthru
      _
    // Predicated region
    $region58: #{tpu_custom_call.1} parent=1 // pred_check
      _
    $region59: #{tpu_custom_call.1} parent=1 // pred_check_branch
      %1124 = sbr.rel (0) target = $region61
    $region60: #{tpu_custom_call.1} parent=1 // pred_region
      %1126 = dma.done [#allocation6], 1024
    $region61: #{tpu_custom_call.1} parent=1 // pred_fallthru
      _
    %1127 = vsyncpa [#allocation5], 1
    %1128 = vsyncpa [#allocation8], 1
    %1129 = vsyncpa [#allocation11], 1
    %1130 = vsyncpa [#allocation6], 1

</llo_original>
